<compile_context>
chip_gen: v7x
topology: tpu7x:2x2x1
jax: 0.10.0
libtpu: 0.0.40
codegen_flags: <defaults>
</compile_context>

<pallas_src>
import functools

import jax
import jax.numpy as jnp
from jax.experimental import pallas as pl
from jax.experimental.pallas import tpu as pltpu

_LANE = 128      # lane width / MXU alignment for the feature dim
_SUBLANE = 8     # sublane alignment for the batch tile


def _round_up(v, m):
    return (v + m - 1) // m * m


def _one_layer_net_kernel(x_ref, wt_ref, b_ref, o_ref):
    """One grid step: y = relu(x @ W.T + b) @ W.T + b for a (TN, D) tile of x.

    wt_ref holds W.T (pre-transposed in the wrapper), so both matmuls are
    standard (last dim of LHS) x (first dim of RHS) contractions.
    """
    x = x_ref[...].astype(jnp.bfloat16)   # f32 tile streamed over N, cast in-kernel
    wt = wt_ref[...]                      # (D, D) bf16 W.T, VMEM-resident
    b = b_ref[...]                        # (1, D) f32 bias, VMEM-resident

    h = jnp.dot(x, wt, preferred_element_type=jnp.float32) + b
    h_relu = jnp.maximum(h, 0.0)          # .clamp(min=0), kept in f32
    y = jnp.dot(h_relu.astype(jnp.bfloat16), wt,
                preferred_element_type=jnp.float32) + b
    o_ref[...] = y.astype(o_ref.dtype)


def _vmem_limit_bytes():
    """~85% of this generation's VMEM capacity (fallback: 64 MiB, v7x per-TC)."""
    try:
        cap = int(pltpu.get_tpu_info().vmem_capacity_bytes)
    except Exception:
        cap = 64 * 1024 * 1024
    return int(0.85 * cap)


def _pick_block_n(n, d_pad, out_itemsize, vmem_limit):
    """Largest batch tile <= 512 keeping >=4 grid steps and fitting VMEM."""
    bn = min(512, _round_up(max(n // 4, _SUBLANE), _SUBLANE))
    bn = max(bn, _SUBLANE)
    # Resident operands are single-buffered (Buffered(1)).
    w_bytes = d_pad * d_pad * 2 + d_pad * 4
    while bn > _SUBLANE:
        x_tiles = 2 * bn * d_pad * 4               # f32 input, double-buffered
        o_tiles = 2 * bn * d_pad * out_itemsize    # output, double-buffered
        scratch = 3 * bn * d_pad * 4               # h / h_relu / y intermediates
        if w_bytes + x_tiles + o_tiles + scratch <= int(0.8 * vmem_limit):
            break
        bn = _round_up(bn // 2, _SUBLANE)
    return bn


@functools.partial(jax.jit, static_argnames=("block_n", "out_dtype"))
def one_layer_net(x, weight, bias, *, block_n=None, out_dtype=jnp.float32):
    """x: (N, D_in); weight: (D_out, D_in) [PyTorch nn.Linear layout]; bias: (D_out,)."""
    n, d_in = x.shape
    d_out, d_in_w = weight.shape
    assert d_in == d_in_w, "weight must be (D_out, D_in)"
    assert d_in == d_out, "linear1 is applied twice, so D_in must equal D_out"

    d_pad = _round_up(d_in, _LANE)
    vmem_limit = _vmem_limit_bytes()
    out_itemsize = jnp.dtype(out_dtype).itemsize
    bn = block_n if block_n is not None else _pick_block_n(
        n, d_pad, out_itemsize, vmem_limit)
    n_pad = _round_up(n, bn)

    # Zero padding is exact: padded x features are 0, padded W.T rows/cols are
    # 0, padded bias is 0 -> real outputs unchanged; padded rows sliced off.
    # Zero-width pads are elided explicitly so the common aligned case does
    # NOT pay an extra HBM pass over x; the bf16 cast happens in-kernel.
    if (n_pad, d_pad) != (n, d_in):
        x_in = jnp.pad(x, ((0, n_pad - n), (0, d_pad - d_in)))
    else:
        x_in = x

    # One-off O(D^2) prep: W.T, padded, bf16 -> resident across all grid steps.
    w_t = jnp.pad(weight.T, ((0, d_pad - d_in), (0, d_pad - d_out))).astype(jnp.bfloat16)
    b2d = jnp.pad(bias, (0, d_pad - d_out)).astype(jnp.float32).reshape(1, d_pad)

    grid = (n_pad // bn,)

    flops = 2 * (2 * n_pad * d_pad * d_pad)        # two (n_pad,d)x(d,d) matmuls
    bytes_accessed = (x_in.size * x_in.dtype.itemsize + w_t.size * 2
                      + b2d.size * 4 + n_pad * d_pad * out_itemsize)

    out = pl.pallas_call(
        _one_layer_net_kernel,
        out_shape=jax.ShapeDtypeStruct((n_pad, d_pad), out_dtype),
        grid=grid,
        in_specs=[
            # x: streamed over the batch, default double-buffered.
            pl.BlockSpec((bn, d_pad), lambda i: (i, 0)),
            # W.T: constant index_map -> resident; single-buffered.
            pl.BlockSpec((d_pad, d_pad), lambda i: (0, 0),
                         pipeline_mode=pl.Buffered(1)),
            # bias: resident; single-buffered.
            pl.BlockSpec((1, d_pad), lambda i: (0, 0),
                         pipeline_mode=pl.Buffered(1)),
        ],
        out_specs=pl.BlockSpec((bn, d_pad), lambda i: (i, 0)),
        compiler_params=pltpu.CompilerParams(
            dimension_semantics=("parallel",),   # megacore sharding on v7x
            vmem_limit_bytes=vmem_limit,
        ),
        cost_estimate=pl.CostEstimate(
            flops=flops, transcendentals=0, bytes_accessed=bytes_accessed),
    )(x_in, w_t, b2d)

    return out[:n, :d_out]


if __name__ == "__main__":
    key = jax.random.PRNGKey(0)
    kx, kw, kb = jax.random.split(key, 3)

    # Main case: batch 256 -> auto-picked 64-row tile, grid of 4 pipelined
    # steps; D_in == D_out == 128 (one full lane/MXU tile, no padding path).
    N, D = 256, 128
    bound = 1.0 / jnp.sqrt(jnp.float32(D))
    # Deterministic init mimicking nn.Linear default: U(-1/sqrt(D_in), 1/sqrt(D_in)).
    weight = jax.random.uniform(kw, (D, D), jnp.float32, -bound, bound)
    bias = jax.random.uniform(kb, (D,), jnp.float32, -bound, bound)
    x = jax.random.normal(kx, (N, D), jnp.float32)

    y = jax.block_until_ready(one_layer_net(x, weight, bias))

    # Pure-JAX f32 reference. Kernel matmuls are bf16 with f32 accumulation,
    # so use a bf16-appropriate tolerance.
    h_ref = jnp.maximum(x @ weight.T + bias, 0.0)
    y_ref = h_ref @ weight.T + bias
    assert y.shape == y_ref.shape
    assert jnp.allclose(y, y_ref, atol=5e-2, rtol=5e-2), float(
        jnp.max(jnp.abs(y - y_ref)))

    # Unaligned small shapes exercise the zero-padding path (padded to 128 lanes).
    N2, D2 = 8, 32
    bound2 = 1.0 / jnp.sqrt(jnp.float32(D2))
    w2 = jax.random.uniform(kw, (D2, D2), jnp.float32, -bound2, bound2)
    b2 = jax.random.uniform(kb, (D2,), jnp.float32, -bound2, bound2)
    x2 = jax.random.normal(kx, (N2, D2), jnp.float32)
    y2 = jax.block_until_ready(one_layer_net(x2, w2, b2))
    y2_ref = jnp.maximum(x2 @ w2.T + b2, 0.0) @ w2.T + b2
    assert jnp.allclose(y2, y2_ref, atol=5e-2, rtol=5e-2), float(
        jnp.max(jnp.abs(y2 - y2_ref)))

    print("KERNEL_OK")
</pallas_src>

<mosaic_0001>
module attributes {stable_mosaic.version = 11 : i64} {
  func.func @_one_layer_net_kernel(%arg0: i32, %arg1: memref<64x128xf32, #tpu.memory_space<vmem>>, %arg2: memref<128x128xbf16, #tpu.memory_space<vmem>>, %arg3: memref<1x128xf32, #tpu.memory_space<vmem>>, %arg4: memref<64x128xf32, #tpu.memory_space<vmem>>) attributes {dimension_semantics = [#tpu.dimension_semantics<parallel>], iteration_bounds = array<i64: 4>, scalar_prefetch = 0 : i64, scratch_operands = 0 : i64, tpu.core_type = #tpu.core_type<tc>, window_params = [{transform_indices = @transform_0, window_bounds = array<i64: 64, 128>}, {pipeline_mode = #tpu.pipeline_mode<synchronous>, transform_indices = @transform_1, window_bounds = array<i64: 128, 128>}, {pipeline_mode = #tpu.pipeline_mode<synchronous>, transform_indices = @transform_2, window_bounds = array<i64: 1, 128>}, {transform_indices = @transform_3, window_bounds = array<i64: 64, 128>}]} {
    %c0 = arith.constant 0 : index
    %c0_0 = arith.constant 0 : index
    %0 = vector.load %arg1[%c0, %c0_0] : memref<64x128xf32, #tpu.memory_space<vmem>>, vector<64x128xf32>
    %1 = arith.truncf %0 : vector<64x128xf32> to vector<64x128xbf16>
    %c0_1 = arith.constant 0 : index
    %c0_2 = arith.constant 0 : index
    %2 = vector.load %arg2[%c0_1, %c0_2] : memref<128x128xbf16, #tpu.memory_space<vmem>>, vector<128x128xbf16>
    %c0_3 = arith.constant 0 : index
    %c0_4 = arith.constant 0 : index
    %3 = vector.load %arg3[%c0_3, %c0_4] : memref<1x128xf32, #tpu.memory_space<vmem>>, vector<1x128xf32>
    %cst = arith.constant dense<0.000000e+00> : vector<64x128xf32>
    %4 = tpu.matmul %1, %2, %cst {dimension_numbers = #tpu.dot_dimension_numbers<[1], [0], [0], [1], [0, 0, 1, 1], [], []>} : vector<64x128xbf16>, vector<128x128xbf16>, vector<64x128xf32> -> vector<64x128xf32>
    %5 = vector.broadcast %3 : vector<1x128xf32> to vector<64x128xf32>
    %6 = arith.addf %4, %5 : vector<64x128xf32>
    %cst_5 = arith.constant 0.000000e+00 : f32
    %7 = vector.broadcast %cst_5 : f32 to vector<64x128xf32>
    %8 = arith.maximumf %6, %7 : vector<64x128xf32>
    %9 = arith.truncf %8 : vector<64x128xf32> to vector<64x128xbf16>
    %cst_6 = arith.constant dense<0.000000e+00> : vector<64x128xf32>
    %10 = tpu.matmul %9, %2, %cst_6 {dimension_numbers = #tpu.dot_dimension_numbers<[1], [0], [0], [1], [0, 0, 1, 1], [], []>} : vector<64x128xbf16>, vector<128x128xbf16>, vector<64x128xf32> -> vector<64x128xf32>
    %11 = vector.broadcast %3 : vector<1x128xf32> to vector<64x128xf32>
    %12 = arith.addf %10, %11 : vector<64x128xf32>
    %c0_7 = arith.constant 0 : index
    %c0_8 = arith.constant 0 : index
    %13 = vector.load %arg4[%c0_7, %c0_8] : memref<64x128xf32, #tpu.memory_space<vmem>>, vector<64x128xf32>
    tpu.vector_store %arg4[%c0_7, %c0_8], %12 {strides = array<i32>} : memref<64x128xf32, #tpu.memory_space<vmem>>, vector<64x128xf32>,
    return
  }
  func.func @transform_0(%arg0: i32) -> (i32, i32) {
    %c0_i32 = arith.constant 0 : i32
    %c0_i32_0 = arith.constant 0 : i32
    return %arg0, %c0_i32 : i32, i32
  }
  func.func @transform_1(%arg0: i32) -> (i32, i32) {
    %c0_i32 = arith.constant 0 : i32
    %c0_i32_0 = arith.constant 0 : i32
    %c0_i32_1 = arith.constant 0 : i32
    return %c0_i32, %c0_i32_0 : i32, i32
  }
  func.func @transform_2(%arg0: i32) -> (i32, i32) {
    %c0_i32 = arith.constant 0 : i32
    %c0_i32_0 = arith.constant 0 : i32
    %c0_i32_1 = arith.constant 0 : i32
    return %c0_i32, %c0_i32_0 : i32, i32
  }
  func.func @transform_3(%arg0: i32) -> (i32, i32) {
    %c0_i32 = arith.constant 0 : i32
    %c0_i32_0 = arith.constant 0 : i32
    return %arg0, %c0_i32 : i32, i32
  }
}

</mosaic_0001>

<llo_original>
// kernel: one_layer_net.1
$region0: #{one_layer_net.1}
  #allocation0 [shape = 'u32[]', space=smem, size = 0x4, offset = 0x4, fixed_abs, tag = 'smem constant byte address 0x4 - core index']
  #allocation1 [shape = 'u32[144,128]{1,0:T(1,128)}', space=vmem, size = 0x12000, scoped, tag = 'internal scratch']
  %s0 = inlined_call_operand.hbm [shape: f32[256,128], index: 0, kind: input, shape index: {}]
  %s1 = inlined_call_operand.vmem [shape: bf16[128,128], index: 1, kind: input, shape index: {}]
  %s2 = inlined_call_operand.vmem [shape: f32[1,128], index: 2, kind: input, shape index: {}]
  %s3 = inlined_call_operand.hbm [shape: f32[256,128], index: 3, kind: output, shape index: {}]
  %s4 = sld [smem:[#allocation0]]
  $region49: #{one_layer_net.1} parent=0
    _
  %s6 = ssub.s32 1, %s4
  %s7 = scalar_select 0, %s6, %s4
  $region1: #{one_layer_net.1} parent=0
    #allocation2 [shape = 'u8[65536]{0}', space=vmem, size = 0x10000, scoped, tag = 'input window, operand 0']
    #allocation3 [shape = 's32[2]{0}', space=sflag, size = 0x8, scoped, tag = 'scoped memory for one_layer_net.1']
    #allocation4 [shape = 's32[2]{0}', space=sflag, size = 0x8, scoped, tag = 'scoped memory for one_layer_net.1']
    #allocation5 [shape = 'u8[65536]{0}', space=vmem, size = 0x10000, scoped, tag = 'output window, operand 0']
    %8 = vsyncpa [#allocation3], 0
    %s9 = scalar_lea.sflag [#allocation3], 1
    %10 = vsyncpa %s9, 0
    %11 = vsyncpa [#allocation4], 0
    %s12 = scalar_lea.sflag [#allocation4], 1
    %13 = vsyncpa %s12, 0
    loop: start=0, step=1, limit=6
    $region2: #{one_layer_net.1} parent=1 // loop_pre_header
      _
    $region3: #{one_layer_net.1} parent=1 // loop_header
      %s15 = sphi 0, %s19
      %p16 = scmp.ge.s32.totalorder %s15, 6
      %s25 = sphi 0, %s27
      %s28 = sphi 0, %s25
      %s29 = sphi 0, %s28
      %s45 = sphi 0, %s29
      %s49 = sphi 0, %s49
      %s51 = sphi 0, %s49
      %s52 = sphi 0, %s51
      %s66 = sphi 0, %s52
      %s70 = sphi 0, %s70
      %s72 = sphi 0, %s70
      %s73 = sphi 0, %s72
      %s87 = sphi 0, %s73
      %s93 = sphi 0, %s95
      %s96 = sphi 0, %s93
      %s97 = sphi 0, %s96
      %s113 = sphi 0, %s97
    $region4: #{one_layer_net.1} parent=1 // loop_header_branch
      %18 = sbr.rel (%p16) target = $region8
    $region5: #{one_layer_net.1} parent=1 // loop_body
      %s20 = ssub.s32 %s15, 1
      %s21 = ssub.s32 %s15, 2
      %s22 = sadd.s32 %s15, 1
      %s23 = ssub.s32 %s15, %s22
      %p24 = scmp.eq.s32.totalorder %s23, 0
      %s26 = sadd.s32 %s25, 1
      %s27 = scalar_select %p24, %s25, %s26
      %p30 = pneg %p24
      %p31 = scmp.eq.s32.totalorder %s15, 3
      %p32 = por %p30, %p31
      %p33 = scmp.ne.s32.totalorder %s25, %s28
      %p34 = scmp.eq.s32.totalorder %s15, 0
      %p35 = por %p33, %p34
      %p36 = scmp.ne.s32.totalorder %s25, %s28
      %p37 = scmp.eq.s32.totalorder %s20, 3
      %p38 = por %p36, %p37
      %p39 = scmp.ne.s32.totalorder %s28, %s29
      %p40 = scmp.eq.s32.totalorder %s20, 0
      %p41 = por %p39, %p40
      %p42 = scmp.ne.s32.totalorder %s28, %s29
      %p43 = scmp.eq.s32.totalorder %s21, 3
      %p44 = por %p42, %p43
      %p46 = scmp.ne.s32.totalorder %s29, %s45
      %p47 = scmp.eq.s32.totalorder %s21, 0
      %p48 = por %p46, %p47
      %s50 = sadd.s32 %s49, 1
      %p53 = scmp.eq.s32.totalorder %s15, 3
      %p54 = scmp.ne.s32.totalorder %s49, %s51
      %p55 = scmp.eq.s32.totalorder %s15, 0
      %p56 = por %p54, %p55
      %p57 = scmp.ne.s32.totalorder %s49, %s51
      %p58 = scmp.eq.s32.totalorder %s20, 3
      %p59 = por %p57, %p58
      %p60 = scmp.ne.s32.totalorder %s51, %s52
      %p61 = scmp.eq.s32.totalorder %s20, 0
      %p62 = por %p60, %p61
      %p63 = scmp.ne.s32.totalorder %s51, %s52
      %p64 = scmp.eq.s32.totalorder %s21, 3
      %p65 = por %p63, %p64
      %p67 = scmp.ne.s32.totalorder %s52, %s66
      %p68 = scmp.eq.s32.totalorder %s21, 0
      %p69 = por %p67, %p68
      %s71 = sadd.s32 %s70, 1
      %p74 = scmp.eq.s32.totalorder %s15, 3
      %p75 = scmp.ne.s32.totalorder %s70, %s72
      %p76 = scmp.eq.s32.totalorder %s15, 0
      %p77 = por %p75, %p76
      %p78 = scmp.ne.s32.totalorder %s70, %s72
      %p79 = scmp.eq.s32.totalorder %s20, 3
      %p80 = por %p78, %p79
      %p81 = scmp.ne.s32.totalorder %s72, %s73
      %p82 = scmp.eq.s32.totalorder %s20, 0
      %p83 = por %p81, %p82
      %p84 = scmp.ne.s32.totalorder %s72, %s73
      %p85 = scmp.eq.s32.totalorder %s21, 3
      %p86 = por %p84, %p85
      %p88 = scmp.ne.s32.totalorder %s73, %s87
      %p89 = scmp.eq.s32.totalorder %s21, 0
      %p90 = por %p88, %p89
      %s91 = ssub.s32 %s15, %s22
      %p92 = scmp.eq.s32.totalorder %s91, 0
      %s94 = sadd.s32 %s93, 1
      %s95 = scalar_select %p92, %s93, %s94
      %p98 = pneg %p92
      %p99 = scmp.eq.s32.totalorder %s15, 3
      %p100 = por %p98, %p99
      %p101 = scmp.ne.s32.totalorder %s93, %s96
      %p102 = scmp.eq.s32.totalorder %s15, 0
      %p103 = por %p101, %p102
      %p104 = scmp.ne.s32.totalorder %s93, %s96
      %p105 = scmp.eq.s32.totalorder %s20, 3
      %p106 = por %p104, %p105
      %p107 = scmp.ne.s32.totalorder %s96, %s97
      %p108 = scmp.eq.s32.totalorder %s20, 0
      %p109 = por %p107, %p108
      %p110 = scmp.ne.s32.totalorder %s96, %s97
      %p111 = scmp.eq.s32.totalorder %s21, 3
      %p112 = por %p110, %p111
      %p114 = scmp.ne.s32.totalorder %s97, %s113
      %p115 = scmp.eq.s32.totalorder %s21, 0
      %p116 = por %p114, %p115
      %p117 = scmp.le.s32.totalorder 1, %s15
      %p118 = scmp.lt.s32.totalorder %s15, 5
      %p119 = pnand %p117, %p118
      %p120 = pneg %p119
      // Predicated region
      $region9: #{one_layer_net.1} parent=5 // pred_check
        _
      $region10: #{one_layer_net.1} parent=5 // pred_check_branch
        %122 = sbr.rel (%p119) target = $region12
      $region11: #{one_layer_net.1} parent=5 // pred_region
        %s123 = ssub.s32 %s15, 1
        // Predicated region
        $region13: #{one_layer_net.1} parent=11 // pred_check
          %p124 = pneg %p62
        $region14: #{one_layer_net.1} parent=11 // pred_check_branch
          %126 = sbr.rel (%p124) target = $region16
        $region15: #{one_layer_net.1} parent=11 // pred_region
          _
        $region16: #{one_layer_net.1} parent=11 // pred_fallthru
          _
        // Predicated region
        $region17: #{one_layer_net.1} parent=11 // pred_check
          %p127 = pneg %p83
        $region18: #{one_layer_net.1} parent=11 // pred_check_branch
          %129 = sbr.rel (%p127) target = $region20
        $region19: #{one_layer_net.1} parent=11 // pred_region
          _
        $region20: #{one_layer_net.1} parent=11 // pred_fallthru
          _
      $region12: #{one_layer_net.1} parent=5 // pred_fallthru
        _
      %p130 = scmp.lt.s32.totalorder %s15, 4
      // Predicated region
      $region21: #{one_layer_net.1} parent=5 // pred_check
        %p131 = pneg %p130
      $region22: #{one_layer_net.1} parent=5 // pred_check_branch
        %133 = sbr.rel (%p131) target = $region24
      $region23: #{one_layer_net.1} parent=5 // pred_region
        // Predicated region
        $region25: #{one_layer_net.1} parent=23 // pred_check
          %p134 = pneg %p35
        $region26: #{one_layer_net.1} parent=23 // pred_check_branch
          %136 = sbr.rel (%p134) target = $region28
        $region27: #{one_layer_net.1} parent=23 // pred_region
          %s137 = sand.u32 %s25, 1
          %s138 = scalar_lea.sflag [#allocation3], %s137
          %s139 = sand.u32 %s25, 1
          %s140 = smul.addr %s139, 64
          %s141 = scalar_lea.vmem [#allocation2], %s140
          %s142 = smul.u32 8, %s15
          %s144 = ssub.s32 1024, 1024
          %145 = vsyncadd %s138, %s144
          %s146 = smul.addr %s142, 128
          %s147 = scalar_lea.hbm %s0, %s146
          %s148 = sshll.u32 %s141, 4
          %s149 = int_to_ptr.vmem [resolvable:$true] %s148
          %154 = dma.hbm_to_vmem [thread:$0]  %s147, 1024, %s149, %s138, 128, 128, 8
        $region28: #{one_layer_net.1} parent=23 // pred_fallthru
          _
      $region24: #{one_layer_net.1} parent=5 // pred_fallthru
        _
      %p155 = scmp.le.s32.totalorder 1, %s15
      %p156 = scmp.lt.s32.totalorder %s15, 5
      %p157 = pnand %p155, %p156
      %p158 = pneg %p157
      // Predicated region
      $region29: #{one_layer_net.1} parent=5 // pred_check
        _
      $region30: #{one_layer_net.1} parent=5 // pred_check_branch
        %160 = sbr.rel (%p157) target = $region32
      $region31: #{one_layer_net.1} parent=5 // pred_region
        %s161 = ssub.s32 %s15, 1
        %s162 = sand.u32 %s28, 1
        %s163 = scalar_lea.sflag [#allocation3], %s162
        %s164 = sand.u32 %s28, 1
        %s165 = smul.addr %s164, 64
        %s166 = scalar_lea.vmem [#allocation2], %s165
        // Predicated region
        $region33: #{one_layer_net.1} parent=31 // pred_check
          %p167 = pneg %p41
        $region34: #{one_layer_net.1} parent=31 // pred_check_branch
          %169 = sbr.rel (%p167) target = $region36
        $region35: #{one_layer_net.1} parent=31 // pred_region
          %170 = dma.done %s163, 1024
        $region36: #{one_layer_net.1} parent=31 // pred_fallthru
          _
        %s171 = sand.u32 %s28, 1
        %s172 = scalar_lea.sflag [#allocation3], %s171
        %s173 = sand.u32 %s28, 1
        %s174 = smul.addr %s173, 64
        %s175 = scalar_lea.vmem [#allocation2], %s174
        %p176 = pneg %p41
        %p177 = pneg %p38
        %p178 = pneg %p62
        %p179 = pneg %p59
        %p180 = pneg %p83
        %p181 = pneg %p80
        %p182 = pneg %p109
        %p183 = pneg %p106
        %s184 = sand.u32 %s96, 1
        %s185 = scalar_lea.sflag [#allocation4], %s184
        %s186 = sand.u32 %s96, 1
        %s187 = smul.addr %s186, 64
        %s188 = scalar_lea.vmem [#allocation5], %s187
        %s189 = smul.u32 8, %s20
        %s190 = smul.u32 8, %s20
        %v192 = vld [vmem:[%s166] sm:$0xff]
        %v193 = vld [vmem:[%s166 + $0x8] sm:$0xff]
        %v194 = vld [vmem:[%s166 + $0x10] sm:$0xff]
        %v195 = vld [vmem:[%s166 + $0x18] sm:$0xff]
        %v196 = vld [vmem:[%s166 + $0x20] sm:$0xff]
        %v197 = vld [vmem:[%s166 + $0x28] sm:$0xff]
        %v198 = vld [vmem:[%s166 + $0x30] sm:$0xff]
        %v199 = vld [vmem:[%s166 + $0x38] sm:$0xff]
        %v200 = vpack.c.bf16 %v193, %v192
        %v201 = vpack.c.bf16 %v195, %v194
        %v202 = vpack.c.bf16 %v197, %v196
        %v203 = vpack.c.bf16 %v199, %v198
        %v204 = vld [vmem:[%s1] sm:$0xf]
        %v205 = vld [vmem:[%s1 + $0x4] sm:$0xf]
        %v206 = vld [vmem:[%s1 + $0x8] sm:$0xf]
        %v207 = vld [vmem:[%s1 + $0xc] sm:$0xf]
        %v208 = vld [vmem:[%s1 + $0x10] sm:$0xf]
        %v209 = vld [vmem:[%s1 + $0x14] sm:$0xf]
        %v210 = vld [vmem:[%s1 + $0x18] sm:$0xf]
        %v211 = vld [vmem:[%s1 + $0x1c] sm:$0xf]
        %v212 = vld [vmem:[%s1 + $0x20] sm:$0xf]
        %v213 = vld [vmem:[%s1 + $0x24] sm:$0xf]
        %v214 = vld [vmem:[%s1 + $0x28] sm:$0xf]
        %v215 = vld [vmem:[%s1 + $0x2c] sm:$0xf]
        %v216 = vld [vmem:[%s1 + $0x30] sm:$0xf]
        %v217 = vld [vmem:[%s1 + $0x34] sm:$0xf]
        %v218 = vld [vmem:[%s1 + $0x38] sm:$0xf]
        %v219 = vld [vmem:[%s1 + $0x3c] sm:$0xf]
        %v220 = vld [vmem:[%s2] sm:$0x1]
        %v222 = vlaneseq
        %v223 = vshrl.u32 %v222, 7
        %v224 = vsub.s32 0, %v223
        %v225 = vrot.slane %v220, %v224
        %v243 = vunpack.c.l.b16 %v204
        %v244 = vunpack.c.l.b16 %v205
        %v245 = vunpack.c.l.b16 %v206
        %v246 = vunpack.c.l.b16 %v207
        %v247 = vunpack.c.l.b16 %v208
        %v248 = vunpack.c.l.b16 %v209
        %v249 = vunpack.c.l.b16 %v210
        %v250 = vunpack.c.l.b16 %v211
        %v251 = vunpack.c.l.b16 %v212
        %v252 = vunpack.c.l.b16 %v213
        %v253 = vunpack.c.l.b16 %v214
        %v254 = vunpack.c.l.b16 %v215
        %v255 = vunpack.c.l.b16 %v216
        %v256 = vunpack.c.l.b16 %v217
        %v257 = vunpack.c.l.b16 %v218
        %v258 = vunpack.c.l.b16 %v219
        %v259 = vpack.c.b16 %v244, %v243
        %v260 = vpack.c.b16 %v246, %v245
        %v261 = vpack.c.b16 %v248, %v247
        %v262 = vpack.c.b16 %v250, %v249
        %v263 = vpack.c.b16 %v252, %v251
        %v264 = vpack.c.b16 %v254, %v253
        %v265 = vpack.c.b16 %v256, %v255
        %v266 = vpack.c.b16 %v258, %v257
        %275 = vmatprep.subr.bf16.mxu0 0
        %276 = vmatpush1.bf16.msra.mxu0 %v259
        %277 = vmatprep.subr.bf16.mxu0 0
        %278 = vmatpush1.bf16.msra.mxu0 %v260
        %279 = vmatprep.subr.bf16.mxu0 0
        %280 = vmatpush1.bf16.msra.mxu0 %v261
        %281 = vmatprep.subr.bf16.mxu0 0
        %282 = vmatpush1.bf16.msra.mxu0 %v262
        %283 = vmatprep.subr.bf16.mxu0 0
        %284 = vmatpush1.bf16.msra.mxu0 %v263
        %285 = vmatprep.subr.bf16.mxu0 0
        %286 = vmatpush1.bf16.msra.mxu0 %v264
        %287 = vmatprep.subr.bf16.mxu0 0
        %288 = vmatpush1.bf16.msra.mxu0 %v265
        %289 = vmatprep.subr.bf16.mxu0 0
        %290 = vmatpush1.bf16.msra.mxu0 %v266
        %291 = vmatprep.subr.bf16.mxu0 0
        %292 = vmatpush1.bf16.msra.mxu0 0
        %293 = vmatprep.subr.bf16.mxu0 0
        %294 = vmatpush1.bf16.msra.mxu0 0
        %295 = vmatprep.subr.bf16.mxu0 0
        %296 = vmatpush1.bf16.msra.mxu0 0
        %297 = vmatprep.subr.bf16.mxu0 0
        %298 = vmatpush1.bf16.msra.mxu0 0
        %299 = vmatprep.subr.bf16.mxu0 0
        %300 = vmatpush1.bf16.msra.mxu0 0
        %301 = vmatprep.subr.bf16.mxu0 0
        %302 = vmatpush1.bf16.msra.mxu0 0
        %303 = vmatprep.subr.bf16.mxu0 0
        %304 = vmatpush1.bf16.msra.mxu0 0
        %305 = vmatprep.subr.bf16.mxu0 0
        %306 = vmatpush1.bf16.msra.mxu0 0
        %307 = vmatprep.mubr.bf16.mxu0 0
        %308 = vmatmul.mubr.bf16.gmra.mrb[0].mxu0 %v200
        %v309 = vpop.f32.mrb[0].mxu0
        %v310 = vadd.f32 %v225, %v309
        %v311 = vpop.f32.mrb[0].mxu0
        %v312 = vpop.f32.mrb[0].mxu0
        %v313 = vadd.f32 %v225, %v312
        %v314 = vpop.f32.mrb[0].mxu0
        %315 = vmatprep.mubr.bf16.mxu0 0
        %316 = vmatmul.mubr.bf16.gmra.mrb[0].mxu0 %v201
        %v317 = vpop.f32.mrb[0].mxu0
        %v318 = vadd.f32 %v225, %v317
        %v319 = vpop.f32.mrb[0].mxu0
        %v320 = vpop.f32.mrb[0].mxu0
        %v321 = vadd.f32 %v225, %v320
        %v322 = vpop.f32.mrb[0].mxu0
        %323 = vmatprep.mubr.bf16.mxu0 0
        %324 = vmatmul.mubr.bf16.gmra.mrb[0].mxu0 %v202
        %v325 = vpop.f32.mrb[0].mxu0
        %v326 = vadd.f32 %v225, %v325
        %v327 = vpop.f32.mrb[0].mxu0
        %v328 = vpop.f32.mrb[0].mxu0
        %v329 = vadd.f32 %v225, %v328
        %v330 = vpop.f32.mrb[0].mxu0
        %331 = vmatprep.mubr.bf16.mxu0 0
        %332 = vmatmul.mubr.bf16.gmra.mrb[0].mxu0 %v203
        %v333 = vpop.f32.mrb[0].mxu0
        %v334 = vadd.f32 %v225, %v333
        %v335 = vpop.f32.mrb[0].mxu0
        %v336 = vpop.f32.mrb[0].mxu0
        %v337 = vadd.f32 %v225, %v336
        %v338 = vpop.f32.mrb[0].mxu0
        %339 = vdwg.mxu0
        %v340 = vmax.f32 %v310, 0.0
        %v341 = vmax.f32 %v313, 0.0
        %v342 = vmax.f32 %v318, 0.0
        %v343 = vmax.f32 %v321, 0.0
        %v344 = vmax.f32 %v326, 0.0
        %v345 = vmax.f32 %v329, 0.0
        %v346 = vmax.f32 %v334, 0.0
        %v347 = vmax.f32 %v337, 0.0
        %v348 = vpack.c.bf16 %v341, %v340
        %v349 = vpack.c.bf16 %v343, %v342
        %v350 = vpack.c.bf16 %v345, %v344
        %v351 = vpack.c.bf16 %v347, %v346
        %352 = vmatprep.subr.bf16.mxu0 0
        %353 = vmatpush1.bf16.msra.mxu0 %v259
        %354 = vmatprep.subr.bf16.mxu0 0
        %355 = vmatpush1.bf16.msra.mxu0 %v260
        %356 = vmatprep.subr.bf16.mxu0 0
        %357 = vmatpush1.bf16.msra.mxu0 %v261
        %358 = vmatprep.subr.bf16.mxu0 0
        %359 = vmatpush1.bf16.msra.mxu0 %v262
        %360 = vmatprep.subr.bf16.mxu0 0
        %361 = vmatpush1.bf16.msra.mxu0 %v263
        %362 = vmatprep.subr.bf16.mxu0 0
        %363 = vmatpush1.bf16.msra.mxu0 %v264
        %364 = vmatprep.subr.bf16.mxu0 0
        %365 = vmatpush1.bf16.msra.mxu0 %v265
        %366 = vmatprep.subr.bf16.mxu0 0
        %367 = vmatpush1.bf16.msra.mxu0 %v266
        %368 = vmatprep.subr.bf16.mxu0 0
        %369 = vmatpush1.bf16.msra.mxu0 0
        %370 = vmatprep.subr.bf16.mxu0 0
        %371 = vmatpush1.bf16.msra.mxu0 0
        %372 = vmatprep.subr.bf16.mxu0 0
        %373 = vmatpush1.bf16.msra.mxu0 0
        %374 = vmatprep.subr.bf16.mxu0 0
        %375 = vmatpush1.bf16.msra.mxu0 0
        %376 = vmatprep.subr.bf16.mxu0 0
        %377 = vmatpush1.bf16.msra.mxu0 0
        %378 = vmatprep.subr.bf16.mxu0 0
        %379 = vmatpush1.bf16.msra.mxu0 0
        %380 = vmatprep.subr.bf16.mxu0 0
        %381 = vmatpush1.bf16.msra.mxu0 0
        %382 = vmatprep.subr.bf16.mxu0 0
        %383 = vmatpush1.bf16.msra.mxu0 0
        %384 = vmatprep.mubr.bf16.mxu0 0
        %385 = vmatmul.mubr.bf16.gmra.mrb[0].mxu0 %v348
        %v386 = vpop.f32.mrb[0].mxu0
        %v387 = vadd.f32 %v225, %v386
        %v388 = vpop.f32.mrb[0].mxu0
        %v389 = vpop.f32.mrb[0].mxu0
        %v390 = vadd.f32 %v225, %v389
        %v391 = vpop.f32.mrb[0].mxu0
        %392 = vmatprep.mubr.bf16.mxu0 0
        %393 = vmatmul.mubr.bf16.gmra.mrb[0].mxu0 %v349
        %v394 = vpop.f32.mrb[0].mxu0
        %v395 = vadd.f32 %v225, %v394
        %v396 = vpop.f32.mrb[0].mxu0
        %v397 = vpop.f32.mrb[0].mxu0
        %v398 = vadd.f32 %v225, %v397
        %v399 = vpop.f32.mrb[0].mxu0
        %400 = vmatprep.mubr.bf16.mxu0 0
        %401 = vmatmul.mubr.bf16.gmra.mrb[0].mxu0 %v350
        %v402 = vpop.f32.mrb[0].mxu0
        %v403 = vadd.f32 %v225, %v402
        %v404 = vpop.f32.mrb[0].mxu0
        %v405 = vpop.f32.mrb[0].mxu0
        %v406 = vadd.f32 %v225, %v405
        %v407 = vpop.f32.mrb[0].mxu0
        %408 = vmatprep.mubr.bf16.mxu0 0
        %409 = vmatmul.mubr.bf16.gmra.mrb[0].mxu0 %v351
        %v410 = vpop.f32.mrb[0].mxu0
        %v411 = vadd.f32 %v225, %v410
        %v412 = vpop.f32.mrb[0].mxu0
        %v413 = vpop.f32.mrb[0].mxu0
        %v414 = vadd.f32 %v225, %v413
        %v415 = vpop.f32.mrb[0].mxu0
        %416 = vdwg.mxu0
        %417 = vst [vmem:[%s188] sm:$0xff] %v387
        %418 = vst [vmem:[%s188 + $0x8] sm:$0xff] %v390
        %419 = vst [vmem:[%s188 + $0x10] sm:$0xff] %v395
        %420 = vst [vmem:[%s188 + $0x18] sm:$0xff] %v398
        %421 = vst [vmem:[%s188 + $0x20] sm:$0xff] %v403
        %422 = vst [vmem:[%s188 + $0x28] sm:$0xff] %v406
        %423 = vst [vmem:[%s188 + $0x30] sm:$0xff] %v411
        %424 = vst [vmem:[%s188 + $0x38] sm:$0xff] %v414
        %s425 = sand.u32 %s96, 1
        %s426 = scalar_lea.sflag [#allocation4], %s425
        %s427 = sand.u32 %s96, 1
        %s428 = smul.addr %s427, 64
        %s429 = scalar_lea.vmem [#allocation5], %s428
        // Predicated region
        $region37: #{one_layer_net.1} parent=31 // pred_check
          %p430 = pneg %p106
        $region38: #{one_layer_net.1} parent=31 // pred_check_branch
          %432 = sbr.rel (%p430) target = $region40
        $region39: #{one_layer_net.1} parent=31 // pred_region
          %s433 = smul.u32 8, %s20
          %s435 = ssub.s32 1024, 1024
          %436 = vsyncadd %s426, %s435
          %s437 = smul.addr %s433, 128
          %s438 = scalar_lea.hbm %s3, %s437
          %s439 = sshll.u32 %s429, 4
          %s440 = int_to_ptr.vmem [resolvable:$true] %s439
          %445 = dma.vmem_to_hbm [thread:$0]  %s440, 1024, %s438, %s426, 128, 128, 8
        $region40: #{one_layer_net.1} parent=31 // pred_fallthru
          _
      $region32: #{one_layer_net.1} parent=5 // pred_fallthru
        _
      %p446 = scmp.le.s32.totalorder 2, %s15
      // Predicated region
      $region41: #{one_layer_net.1} parent=5 // pred_check
        %p447 = pneg %p446
      $region42: #{one_layer_net.1} parent=5 // pred_check_branch
        %449 = sbr.rel (%p447) target = $region44
      $region43: #{one_layer_net.1} parent=5 // pred_region
        %s450 = ssub.s32 %s15, 2
        // Predicated region
        $region45: #{one_layer_net.1} parent=43 // pred_check
          %p451 = pneg %p112
        $region46: #{one_layer_net.1} parent=43 // pred_check_branch
          %453 = sbr.rel (%p451) target = $region48
        $region47: #{one_layer_net.1} parent=43 // pred_region
          %s454 = sand.u32 %s97, 1
          %s455 = scalar_lea.sflag [#allocation4], %s454
          %s456 = sand.u32 %s97, 1
          %s457 = smul.addr %s456, 64
          %s458 = scalar_lea.vmem [#allocation5], %s457
          %459 = dma.done %s455, 1024
        $region48: #{one_layer_net.1} parent=43 // pred_fallthru
          _
      $region44: #{one_layer_net.1} parent=5 // pred_fallthru
        _
    $region6: #{one_layer_net.1} parent=1 // loop_footer
      %s19 = sadd.s32 1, %s15
    $region7: #{one_layer_net.1} parent=1 // loop_footer_branch
      %14 = sbr.rel target = $region3
    $region8: #{one_layer_net.1} parent=1 // loop_exit
      _
    %460 = vsyncpa [#allocation3], 1
    %s461 = scalar_lea.sflag [#allocation3], 1
    %462 = vsyncpa %s461, 1
    %463 = vsyncpa [#allocation4], 1
    %s464 = scalar_lea.sflag [#allocation4], 1
    %465 = vsyncpa %s464, 1

</llo_original>
